<compile_context>
chip_gen: v7x
topology: tpu7x:2x2x1
jax: 0.10.0
libtpu: 0.0.40
codegen_flags: <defaults>
</compile_context>

<pallas_src>
import math

import jax
import jax.numpy as jnp
from jax.experimental import pallas as pl
from jax.experimental.pallas import tpu as pltpu


def _round_up(v, m):
    return (v + m - 1) // m * m


def _lora_kernel(x_ref, wt_ref, bias_ref, h_ref, bs_ref, o_ref, acc_ref):
    k = pl.program_id(2)

    @pl.when(k == 0)
    def _():
        # Accumulator init = bias + scaled LoRA correction (tiny rank
        # contraction on the MXU), once per (i, j) output tile.
        lora = jnp.dot(h_ref[...], bs_ref[...],
                       preferred_element_type=jnp.float32)
        acc_ref[...] = lora + bias_ref[...].astype(jnp.float32)

    # Frozen base path: accumulate x_tile @ (W^T)_tile on the MXU (f32 acc).
    acc_ref[...] += jnp.dot(x_ref[...], wt_ref[...],
                            preferred_element_type=jnp.float32)

    @pl.when(k == pl.num_programs(2) - 1)
    def _():
        o_ref[...] = acc_ref[...].astype(o_ref.dtype)


def lora_linear(x, w, b, lora_a, lora_b, *, alpha=16.0,
                compute_dtype=jnp.bfloat16, tm=512, tn=1024, tk=1024):
    """x: (..., in_features) -> (..., out_features).

    PyTorch layouts: w: (out, in), b: (out,), lora_a: (rank, in),
    lora_b: (out, rank).  Transposes / scaling / dtype casts are hoisted here
    (weights are frozen and small relative to the matmuls).
    """
    out_features, in_features = w.shape
    rank = lora_a.shape[0]
    scaling = float(alpha) / float(rank)
    lead_shape = x.shape[:-1]
    m = int(math.prod(lead_shape)) if lead_shape else 1
    out_dtype = x.dtype

    # --- one-time layout / dtype work ---------------------------------------
    x2d = x.reshape(m, in_features).astype(compute_dtype)
    wt = jnp.transpose(w).astype(compute_dtype)                    # (K, N)
    at = jnp.transpose(lora_a).astype(compute_dtype)               # (K, r)
    bs = (scaling * jnp.transpose(lora_b)).astype(compute_dtype)   # (r, N)
    bias2d = b.reshape(1, out_features).astype(jnp.float32)

    # --- (8,128)-aligned tiles, clamped to the (padded) problem size --------
    sub = 16 if jnp.dtype(compute_dtype).itemsize == 2 else 8
    tm = min(tm, _round_up(m, sub))
    tn = min(tn, _round_up(out_features, 128))
    tk = min(tk, _round_up(in_features, 128))
    m_pad = _round_up(m, tm)
    n_pad = _round_up(out_features, tn)
    k_pad = _round_up(in_features, tk)
    r_pad = _round_up(rank, 128)

    if m_pad > m or k_pad > in_features:
        x2d = jnp.pad(x2d, ((0, m_pad - m), (0, k_pad - in_features)))
    if k_pad > in_features or n_pad > out_features:
        wt = jnp.pad(wt, ((0, k_pad - in_features), (0, n_pad - out_features)))
    if k_pad > in_features or r_pad > rank:
        at = jnp.pad(at, ((0, k_pad - in_features), (0, r_pad - rank)))
    if r_pad > rank or n_pad > out_features:
        bs = jnp.pad(bs, ((0, r_pad - rank), (0, n_pad - out_features)))
    if n_pad > out_features:
        bias2d = jnp.pad(bias2d, ((0, 0), (0, n_pad - out_features)))

    # LoRA down-projection hoisted out of the kernel (perf review): one small
    # matmul over x (f32 accumulate, then cast for the MXU inside the kernel).
    h = jnp.dot(x2d, at, preferred_element_type=jnp.float32).astype(compute_dtype)

    grid = (m_pad // tm, n_pad // tn, k_pad // tk)
    n_i, n_j, _ = grid

    # Advisory cost estimate (accounts for re-reads across the grid).
    c_item = jnp.dtype(compute_dtype).itemsize
    flops = 2 * m_pad * n_pad * k_pad + 2 * m_pad * r_pad * n_pad
    bytes_accessed = (
        n_j * m_pad * k_pad * c_item            # x re-read per N tile
        + n_i * k_pad * n_pad * c_item          # W^T re-read per M tile
        + m_pad * r_pad * c_item                # h (once per M tile)
        + n_i * r_pad * n_pad * c_item          # scaled B^T per (i, j)
        + n_i * n_pad * 4                       # bias (f32)
        + m_pad * n_pad * jnp.dtype(out_dtype).itemsize)

    out2d = pl.pallas_call(
        _lora_kernel,
        out_shape=jax.ShapeDtypeStruct((m_pad, n_pad), out_dtype),
        grid_spec=pltpu.PrefetchScalarGridSpec(
            num_scalar_prefetch=0,
            grid=grid,
            in_specs=[
                pl.BlockSpec((tm, tk), lambda i, j, k: (i, k)),      # x
                pl.BlockSpec((tk, tn), lambda i, j, k: (k, j)),      # W^T
                pl.BlockSpec((1, tn), lambda i, j, k: (0, j)),       # bias (f32)
                pl.BlockSpec((tm, r_pad), lambda i, j, k: (i, 0)),   # h = x @ A^T
                pl.BlockSpec((r_pad, tn), lambda i, j, k: (0, j)),   # scaling * B^T
            ],
            out_specs=pl.BlockSpec((tm, tn), lambda i, j, k: (i, j)),
            scratch_shapes=[pltpu.VMEM((tm, tn), jnp.float32)]),     # f32 acc
        compiler_params=pltpu.CompilerParams(
            dimension_semantics=("parallel", "parallel", "arbitrary"),
            vmem_limit_bytes=40 * 1024 * 1024),
        cost_estimate=pl.CostEstimate(
            flops=int(flops), transcendentals=0,
            bytes_accessed=int(bytes_accessed)),
    )(x2d, wt, bias2d, h, bs)

    if m_pad > m or n_pad > out_features:
        out2d = out2d[:m, :out_features]
    return out2d.reshape(*lead_shape, out_features)


if __name__ == "__main__":
    # Small shapes consistent with the module: LoRA wrapping a Linear(32 -> 32).
    batch, seq, in_features, out_features = 2, 8, 32, 32
    rank, alpha = 8, 16.0
    scaling = alpha / rank

    key = jax.random.PRNGKey(0)
    kx, kw, kb, ka, kbB = jax.random.split(key, 5)

    # Frozen nn.Linear default init: uniform(-1/sqrt(in), 1/sqrt(in)).
    bound = 1.0 / math.sqrt(in_features)
    w = jax.random.uniform(kw, (out_features, in_features), jnp.float32,
                           minval=-bound, maxval=bound)
    b = jax.random.uniform(kb, (out_features,), jnp.float32,
                           minval=-bound, maxval=bound)
    # lora_A: kaiming_uniform_(a=sqrt(5)) => uniform(-1/sqrt(in), 1/sqrt(in)).
    lora_a = jax.random.uniform(ka, (rank, in_features), jnp.float32,
                                minval=-bound, maxval=bound)
    # Module's reset_parameters zeros B; also exercise a non-zero B path.
    lora_b_zero = jnp.zeros((out_features, rank), jnp.float32)
    lora_b_rand = 0.1 * jax.random.normal(kbB, (out_features, rank), jnp.float32)

    x = jax.random.normal(kx, (batch, seq, in_features), jnp.float32)

    def ref_bf16_aware(lb):
        # Mirrors the kernel's bf16-operand / f32-accumulate precision.
        f32 = jnp.float32
        xc = x.astype(jnp.bfloat16).astype(f32)
        wc = w.astype(jnp.bfloat16).astype(f32)
        ac = lora_a.astype(jnp.bfloat16).astype(f32)
        bsc = (scaling * lb.T).astype(jnp.bfloat16).astype(f32)
        h = (xc @ ac.T).astype(jnp.bfloat16).astype(f32)
        return xc @ wc.T + b + h @ bsc

    def ref_f32(lb):
        return (x @ w.T + b) + scaling * ((x @ lora_a.T) @ lb.T)

    ok = True
    for lb in (lora_b_zero, lora_b_rand):
        out = lora_linear(x, w, b, lora_a, lb, alpha=alpha)
        out = jax.block_until_ready(out)
        ok &= out.shape == (batch, seq, out_features)
        ok &= bool(jnp.allclose(out, ref_bf16_aware(lb), atol=5e-3, rtol=5e-3))
        ok &= bool(jnp.allclose(out, ref_f32(lb), atol=5e-2, rtol=5e-2))

    assert ok
    print("KERNEL_OK")
</pallas_src>

<mosaic_0001>
module attributes {stable_mosaic.version = 11 : i64} {
  func.func @_lora_kernel(%arg0: i32, %arg1: i32, %arg2: i32, %arg3: memref<16x128xbf16, #tpu.memory_space<vmem>>, %arg4: memref<128x128xbf16, #tpu.memory_space<vmem>>, %arg5: memref<1x128xf32, #tpu.memory_space<vmem>>, %arg6: memref<16x128xbf16, #tpu.memory_space<vmem>>, %arg7: memref<128x128xbf16, #tpu.memory_space<vmem>>, %arg8: memref<16x128xf32, #tpu.memory_space<vmem>>, %arg9: memref<16x128xf32, #tpu.memory_space<vmem>>) attributes {dimension_semantics = [#tpu.dimension_semantics<parallel>, #tpu.dimension_semantics<parallel>, #tpu.dimension_semantics<arbitrary>], iteration_bounds = array<i64: 1, 1, 1>, scalar_prefetch = 0 : i64, scratch_operands = 1 : i64, tpu.core_type = #tpu.core_type<tc>, window_params = [{transform_indices = @transform_0, window_bounds = array<i64: 16, 128>}, {transform_indices = @transform_1, window_bounds = array<i64: 128, 128>}, {transform_indices = @transform_2, window_bounds = array<i64: 1, 128>}, {transform_indices = @transform_3, window_bounds = array<i64: 16, 128>}, {transform_indices = @transform_4, window_bounds = array<i64: 128, 128>}, {transform_indices = @transform_5, window_bounds = array<i64: 16, 128>}]} {
    %c0_i32 = arith.constant 0 : i32
    %0 = arith.cmpi eq, %arg2, %c0_i32 : i32
    %1 = arith.extui %0 : i1 to i32
    %c0_i32_0 = arith.constant 0 : i32
    %2 = arith.cmpi ne, %1, %c0_i32_0 : i32
    scf.if %2 {
      %c0_10 = arith.constant 0 : index
      %c0_11 = arith.constant 0 : index
      %12 = vector.load %arg6[%c0_10, %c0_11] : memref<16x128xbf16, #tpu.memory_space<vmem>>, vector<16x128xbf16>
      %c0_12 = arith.constant 0 : index
      %c0_13 = arith.constant 0 : index
      %13 = vector.load %arg7[%c0_12, %c0_13] : memref<128x128xbf16, #tpu.memory_space<vmem>>, vector<128x128xbf16>
      %cst_14 = arith.constant dense<0.000000e+00> : vector<16x128xf32>
      %14 = tpu.matmul %12, %13, %cst_14 {dimension_numbers = #tpu.dot_dimension_numbers<[1], [0], [0], [1], [0, 0, 1, 1], [], []>} : vector<16x128xbf16>, vector<128x128xbf16>, vector<16x128xf32> -> vector<16x128xf32>
      %c0_15 = arith.constant 0 : index
      %c0_16 = arith.constant 0 : index
      %15 = vector.load %arg5[%c0_15, %c0_16] : memref<1x128xf32, #tpu.memory_space<vmem>>, vector<1x128xf32>
      %16 = vector.broadcast %15 : vector<1x128xf32> to vector<16x128xf32>
      %17 = arith.addf %14, %16 : vector<16x128xf32>
      %c0_17 = arith.constant 0 : index
      %c0_18 = arith.constant 0 : index
      %18 = vector.load %arg9[%c0_17, %c0_18] : memref<16x128xf32, #tpu.memory_space<vmem>>, vector<16x128xf32>
      tpu.vector_store %arg9[%c0_17, %c0_18], %17 {strides = array<i32>} : memref<16x128xf32, #tpu.memory_space<vmem>>, vector<16x128xf32>,
    } else {
    }
    %c0 = arith.constant 0 : index
    %c0_1 = arith.constant 0 : index
    %3 = vector.load %arg9[%c0, %c0_1] : memref<16x128xf32, #tpu.memory_space<vmem>>, vector<16x128xf32>
    %c0_2 = arith.constant 0 : index
    %c0_3 = arith.constant 0 : index
    %4 = vector.load %arg3[%c0_2, %c0_3] : memref<16x128xbf16, #tpu.memory_space<vmem>>, vector<16x128xbf16>
    %c0_4 = arith.constant 0 : index
    %c0_5 = arith.constant 0 : index
    %5 = vector.load %arg4[%c0_4, %c0_5] : memref<128x128xbf16, #tpu.memory_space<vmem>>, vector<128x128xbf16>
    %cst = arith.constant dense<0.000000e+00> : vector<16x128xf32>
    %6 = tpu.matmul %4, %5, %cst {dimension_numbers = #tpu.dot_dimension_numbers<[1], [0], [0], [1], [0, 0, 1, 1], [], []>} : vector<16x128xbf16>, vector<128x128xbf16>, vector<16x128xf32> -> vector<16x128xf32>
    %7 = arith.addf %3, %6 : vector<16x128xf32>
    %c0_6 = arith.constant 0 : index
    %c0_7 = arith.constant 0 : index
    %8 = vector.load %arg9[%c0_6, %c0_7] : memref<16x128xf32, #tpu.memory_space<vmem>>, vector<16x128xf32>
    tpu.vector_store %arg9[%c0_6, %c0_7], %7 {strides = array<i32>} : memref<16x128xf32, #tpu.memory_space<vmem>>, vector<16x128xf32>,
    %c0_i32_8 = arith.constant 0 : i32
    %9 = arith.cmpi eq, %arg2, %c0_i32_8 : i32
    %10 = arith.extui %9 : i1 to i32
    %c0_i32_9 = arith.constant 0 : i32
    %11 = arith.cmpi ne, %10, %c0_i32_9 : i32
    scf.if %11 {
      %c0_10 = arith.constant 0 : index
      %c0_11 = arith.constant 0 : index
      %12 = vector.load %arg9[%c0_10, %c0_11] : memref<16x128xf32, #tpu.memory_space<vmem>>, vector<16x128xf32>
      %c0_12 = arith.constant 0 : index
      %c0_13 = arith.constant 0 : index
      %13 = vector.load %arg8[%c0_12, %c0_13] : memref<16x128xf32, #tpu.memory_space<vmem>>, vector<16x128xf32>
      tpu.vector_store %arg8[%c0_12, %c0_13], %12 {strides = array<i32>} : memref<16x128xf32, #tpu.memory_space<vmem>>, vector<16x128xf32>,
    } else {
    }
    return
  }
  func.func @transform_0(%arg0: i32, %arg1: i32, %arg2: i32) -> (i32, i32) {
    %c0_i32 = arith.constant 0 : i32
    return %arg0, %arg2 : i32, i32
  }
  func.func @transform_1(%arg0: i32, %arg1: i32, %arg2: i32) -> (i32, i32) {
    %c0_i32 = arith.constant 0 : i32
    return %arg2, %arg1 : i32, i32
  }
  func.func @transform_2(%arg0: i32, %arg1: i32, %arg2: i32) -> (i32, i32) {
    %c0_i32 = arith.constant 0 : i32
    %c0_i32_0 = arith.constant 0 : i32
    return %c0_i32, %arg1 : i32, i32
  }
  func.func @transform_3(%arg0: i32, %arg1: i32, %arg2: i32) -> (i32, i32) {
    %c0_i32 = arith.constant 0 : i32
    %c0_i32_0 = arith.constant 0 : i32
    return %arg0, %c0_i32 : i32, i32
  }
  func.func @transform_4(%arg0: i32, %arg1: i32, %arg2: i32) -> (i32, i32) {
    %c0_i32 = arith.constant 0 : i32
    %c0_i32_0 = arith.constant 0 : i32
    return %c0_i32, %arg1 : i32, i32
  }
  func.func @transform_5(%arg0: i32, %arg1: i32, %arg2: i32) -> (i32, i32) {
    %c0_i32 = arith.constant 0 : i32
    return %arg0, %arg1 : i32, i32
  }
}

</mosaic_0001>

<llo_original>
// kernel: tpu_custom_call.1
$region0: #{tpu_custom_call.1}
  #allocation0 [shape = 'u32[]', space=smem, size = 0x4, offset = 0x4, fixed_abs, tag = 'smem constant byte address 0x4 - core index']
  #allocation1 [shape = 'u32[144,128]{1,0:T(1,128)}', space=vmem, size = 0x12000, scoped, tag = 'internal scratch']
  #allocation2 [shape = 'f32[16,128]{1,0:T(8,128)}', space=vmem, size = 0x2000, scoped, tag = 'scratch operand']
  %s0 = inlined_call_operand.hbm [shape: bf16[16,128], index: 0, kind: input, shape index: {}]
  %s1 = inlined_call_operand.hbm [shape: bf16[128,128], index: 1, kind: input, shape index: {}]
  %s2 = inlined_call_operand.vmem [shape: f32[1,128], index: 2, kind: input, shape index: {}]
  %s3 = inlined_call_operand.vmem [shape: bf16[16,128], index: 3, kind: input, shape index: {}]
  %s4 = inlined_call_operand.hbm [shape: bf16[128,128], index: 4, kind: input, shape index: {}]
  %s5 = inlined_call_operand.hbm [shape: f32[16,128], index: 5, kind: output, shape index: {}]
  %s6 = sld [smem:[#allocation0]]
  $region50: #{tpu_custom_call.1} parent=0
    _
  %s8 = ssub.s32 1, %s6
  %s9 = scalar_select 0, %s8, %s6
  $region1: #{tpu_custom_call.1} parent=0
    #allocation3 [shape = 'u8[4096]{0}', space=vmem, size = 0x1000, scoped, tag = 'input window, operand 0, single buffered']
    #allocation4 [shape = 's32[1]{0}', space=sflag, size = 0x4, scoped, tag = 'scoped memory for tpu_custom_call.1']
    #allocation5 [shape = 's32[1]{0}', space=sflag, size = 0x4, scoped, tag = 'scoped memory for tpu_custom_call.1']
    #allocation6 [shape = 'u8[32768]{0}', space=vmem, size = 0x8000, scoped, tag = 'input window, operand 1, single buffered']
    #allocation7 [shape = 's32[1]{0}', space=sflag, size = 0x4, scoped, tag = 'scoped memory for tpu_custom_call.1']
    #allocation8 [shape = 'u8[32768]{0}', space=vmem, size = 0x8000, scoped, tag = 'input window, operand 4, single buffered']
    #allocation9 [shape = 'u8[8192]{0}', space=vmem, size = 0x2000, scoped, tag = 'output window, operand 0, single buffered']
    %10 = vsyncpa [#allocation4], 0
    %11 = vsyncpa [#allocation7], 0
    %12 = vsyncpa [#allocation5], 0
    // Predicated region
    $region2: #{tpu_custom_call.1} parent=1 // pred_check
      _
    $region3: #{tpu_custom_call.1} parent=1 // pred_check_branch
      %14 = sbr.rel (0) target = $region5
    $region4: #{tpu_custom_call.1} parent=1 // pred_region
      %s16 = ssub.s32 128, 128
      %17 = vsyncadd [#allocation4], %s16
      %s18 = sshll.u32 [#allocation3], 4
      %s19 = int_to_ptr.vmem [resolvable:$true] %s18
      %24 = dma.hbm_to_vmem [thread:$0]  %s0, 128, %s19, [#allocation4], 64, 64, 4
    $region5: #{tpu_custom_call.1} parent=1 // pred_fallthru
      _
    // Predicated region
    $region6: #{tpu_custom_call.1} parent=1 // pred_check
      _
    $region7: #{tpu_custom_call.1} parent=1 // pred_check_branch
      %26 = sbr.rel (0) target = $region9
    $region8: #{tpu_custom_call.1} parent=1 // pred_region
      %s28 = ssub.s32 1024, 1024
      %29 = vsyncadd [#allocation7], %s28
      %s30 = sshll.u32 [#allocation6], 4
      %s31 = int_to_ptr.vmem [resolvable:$true] %s30
      %36 = dma.hbm_to_vmem [thread:$0]  %s1, 1024, %s31, [#allocation7], 64, 64, 4
    $region9: #{tpu_custom_call.1} parent=1 // pred_fallthru
      _
    // Predicated region
    $region10: #{tpu_custom_call.1} parent=1 // pred_check
      _
    $region11: #{tpu_custom_call.1} parent=1 // pred_check_branch
      %38 = sbr.rel (0) target = $region13
    $region12: #{tpu_custom_call.1} parent=1 // pred_region
      _
    $region13: #{tpu_custom_call.1} parent=1 // pred_fallthru
      _
    // Predicated region
    $region14: #{tpu_custom_call.1} parent=1 // pred_check
      _
    $region15: #{tpu_custom_call.1} parent=1 // pred_check_branch
      %40 = sbr.rel (0) target = $region17
    $region16: #{tpu_custom_call.1} parent=1 // pred_region
      _
    $region17: #{tpu_custom_call.1} parent=1 // pred_fallthru
      _
    // Predicated region
    $region18: #{tpu_custom_call.1} parent=1 // pred_check
      _
    $region19: #{tpu_custom_call.1} parent=1 // pred_check_branch
      %42 = sbr.rel (0) target = $region21
    $region20: #{tpu_custom_call.1} parent=1 // pred_region
      %s44 = ssub.s32 1024, 1024
      %45 = vsyncadd [#allocation7], %s44
      %s46 = sshll.u32 [#allocation8], 4
      %s47 = int_to_ptr.vmem [resolvable:$true] %s46
      %52 = dma.hbm_to_vmem [thread:$0]  %s4, 1024, %s47, [#allocation7], 64, 64, 4
    $region21: #{tpu_custom_call.1} parent=1 // pred_fallthru
      _
    // Predicated region
    $region22: #{tpu_custom_call.1} parent=1 // pred_check
      _
    $region23: #{tpu_custom_call.1} parent=1 // pred_check_branch
      %54 = sbr.rel (0) target = $region25
    $region24: #{tpu_custom_call.1} parent=1 // pred_region
      %55 = dma.done [#allocation4], 128
    $region25: #{tpu_custom_call.1} parent=1 // pred_fallthru
      _
    // Predicated region
    $region26: #{tpu_custom_call.1} parent=1 // pred_check
      _
    $region27: #{tpu_custom_call.1} parent=1 // pred_check_branch
      %57 = sbr.rel (0) target = $region29
    $region28: #{tpu_custom_call.1} parent=1 // pred_region
      %58 = dma.done [#allocation7], 1024
    $region29: #{tpu_custom_call.1} parent=1 // pred_fallthru
      _
    // Predicated region
    $region30: #{tpu_custom_call.1} parent=1 // pred_check
      _
    $region31: #{tpu_custom_call.1} parent=1 // pred_check_branch
      %60 = sbr.rel (0) target = $region33
    $region32: #{tpu_custom_call.1} parent=1 // pred_region
      %61 = dma.done [#allocation7], 1024
    $region33: #{tpu_custom_call.1} parent=1 // pred_fallthru
      _
    %p63 = scmp.eq.s32.totalorder 0, 0
    // Predicated region
    $region34: #{tpu_custom_call.1} parent=1 // pred_check
      %p64 = pneg %p63
    $region35: #{tpu_custom_call.1} parent=1 // pred_check_branch
      %66 = sbr.rel (%p64) target = $region37
    $region36: #{tpu_custom_call.1} parent=1 // pred_region
      %v67 = vld [vmem:[%s3] sm:$0xf]
      %v68 = vld [vmem:[%s3 + $0x4] sm:$0xf]
      %v69 = vld [vmem:[#allocation8] sm:$0xf]
      %v70 = vld [vmem:[#allocation8 + $0x4] sm:$0xf]
      %v71 = vld [vmem:[#allocation8 + $0x8] sm:$0xf]
      %v72 = vld [vmem:[#allocation8 + $0xc] sm:$0xf]
      %v73 = vld [vmem:[#allocation8 + $0x10] sm:$0xf]
      %v74 = vld [vmem:[#allocation8 + $0x14] sm:$0xf]
      %v75 = vld [vmem:[#allocation8 + $0x18] sm:$0xf]
      %v76 = vld [vmem:[#allocation8 + $0x1c] sm:$0xf]
      %v77 = vld [vmem:[#allocation8 + $0x20] sm:$0xf]
      %v78 = vld [vmem:[#allocation8 + $0x24] sm:$0xf]
      %v79 = vld [vmem:[#allocation8 + $0x28] sm:$0xf]
      %v80 = vld [vmem:[#allocation8 + $0x2c] sm:$0xf]
      %v81 = vld [vmem:[#allocation8 + $0x30] sm:$0xf]
      %v82 = vld [vmem:[#allocation8 + $0x34] sm:$0xf]
      %v83 = vld [vmem:[#allocation8 + $0x38] sm:$0xf]
      %v84 = vld [vmem:[#allocation8 + $0x3c] sm:$0xf]
      %v85 = vld [vmem:[%s2] sm:$0x1]
      %v87 = vlaneseq
      %v88 = vshrl.u32 %v87, 7
      %v89 = vsub.s32 0, %v88
      %v90 = vrot.slane %v85, %v89
      %v94 = vunpack.c.l.b16 %v67
      %v95 = vunpack.c.l.b16 %v68
      %v96 = vpack.c.b16 %v95, %v94
      %v114 = vunpack.c.l.b16 %v69
      %v115 = vunpack.c.l.b16 %v70
      %v116 = vunpack.c.l.b16 %v71
      %v117 = vunpack.c.l.b16 %v72
      %v118 = vunpack.c.l.b16 %v73
      %v119 = vunpack.c.l.b16 %v74
      %v120 = vunpack.c.l.b16 %v75
      %v121 = vunpack.c.l.b16 %v76
      %v122 = vunpack.c.l.b16 %v77
      %v123 = vunpack.c.l.b16 %v78
      %v124 = vunpack.c.l.b16 %v79
      %v125 = vunpack.c.l.b16 %v80
      %v126 = vunpack.c.l.b16 %v81
      %v127 = vunpack.c.l.b16 %v82
      %v128 = vunpack.c.l.b16 %v83
      %v129 = vunpack.c.l.b16 %v84
      %v130 = vpack.c.b16 %v115, %v114
      %v131 = vpack.c.b16 %v117, %v116
      %v132 = vpack.c.b16 %v119, %v118
      %v133 = vpack.c.b16 %v121, %v120
      %v134 = vpack.c.b16 %v123, %v122
      %v135 = vpack.c.b16 %v125, %v124
      %v136 = vpack.c.b16 %v127, %v126
      %v137 = vpack.c.b16 %v129, %v128
      %146 = vmatprep.subr.bf16.mxu0 0
      %147 = vmatpush1.bf16.msra.mxu0 %v130
      %148 = vmatprep.subr.bf16.mxu0 0
      %149 = vmatpush1.bf16.msra.mxu0 %v131
      %150 = vmatprep.subr.bf16.mxu0 0
      %151 = vmatpush1.bf16.msra.mxu0 %v132
      %152 = vmatprep.subr.bf16.mxu0 0
      %153 = vmatpush1.bf16.msra.mxu0 %v133
      %154 = vmatprep.subr.bf16.mxu0 0
      %155 = vmatpush1.bf16.msra.mxu0 %v134
      %156 = vmatprep.subr.bf16.mxu0 0
      %157 = vmatpush1.bf16.msra.mxu0 %v135
      %158 = vmatprep.subr.bf16.mxu0 0
      %159 = vmatpush1.bf16.msra.mxu0 %v136
      %160 = vmatprep.subr.bf16.mxu0 0
      %161 = vmatpush1.bf16.msra.mxu0 %v137
      %162 = vmatprep.subr.bf16.mxu0 0
      %163 = vmatpush1.bf16.msra.mxu0 0
      %164 = vmatprep.subr.bf16.mxu0 0
      %165 = vmatpush1.bf16.msra.mxu0 0
      %166 = vmatprep.subr.bf16.mxu0 0
      %167 = vmatpush1.bf16.msra.mxu0 0
      %168 = vmatprep.subr.bf16.mxu0 0
      %169 = vmatpush1.bf16.msra.mxu0 0
      %170 = vmatprep.subr.bf16.mxu0 0
      %171 = vmatpush1.bf16.msra.mxu0 0
      %172 = vmatprep.subr.bf16.mxu0 0
      %173 = vmatpush1.bf16.msra.mxu0 0
      %174 = vmatprep.subr.bf16.mxu0 0
      %175 = vmatpush1.bf16.msra.mxu0 0
      %176 = vmatprep.subr.bf16.mxu0 0
      %177 = vmatpush1.bf16.msra.mxu0 0
      %178 = vmatprep.mubr.bf16.mxu0 0
      %179 = vmatmul.mubr.bf16.gmra.mrb[0].mxu0 %v96
      %v180 = vpop.f32.mrb[0].mxu0
      %v181 = vadd.f32 %v90, %v180
      %v182 = vpop.f32.mrb[0].mxu0
      %v183 = vpop.f32.mrb[0].mxu0
      %v184 = vadd.f32 %v90, %v183
      %v185 = vpop.f32.mrb[0].mxu0
      %186 = vdwg.mxu0
      %187 = vst [vmem:[#allocation2] sm:$0xff] %v181
      %188 = vst [vmem:[#allocation2 + $0x8] sm:$0xff] %v184
    $region37: #{tpu_custom_call.1} parent=1 // pred_fallthru
      _
    %v189 = vld [vmem:[#allocation2] sm:$0xff]
    %v190 = vld [vmem:[#allocation2 + $0x8] sm:$0xff]
    %v191 = vld [vmem:[#allocation3] sm:$0xf]
    %v192 = vld [vmem:[#allocation3 + $0x4] sm:$0xf]
    %v193 = vld [vmem:[#allocation6] sm:$0xf]
    %v194 = vld [vmem:[#allocation6 + $0x4] sm:$0xf]
    %v195 = vld [vmem:[#allocation6 + $0x8] sm:$0xf]
    %v196 = vld [vmem:[#allocation6 + $0xc] sm:$0xf]
    %v197 = vld [vmem:[#allocation6 + $0x10] sm:$0xf]
    %v198 = vld [vmem:[#allocation6 + $0x14] sm:$0xf]
    %v199 = vld [vmem:[#allocation6 + $0x18] sm:$0xf]
    %v200 = vld [vmem:[#allocation6 + $0x1c] sm:$0xf]
    %v201 = vld [vmem:[#allocation6 + $0x20] sm:$0xf]
    %v202 = vld [vmem:[#allocation6 + $0x24] sm:$0xf]
    %v203 = vld [vmem:[#allocation6 + $0x28] sm:$0xf]
    %v204 = vld [vmem:[#allocation6 + $0x2c] sm:$0xf]
    %v205 = vld [vmem:[#allocation6 + $0x30] sm:$0xf]
    %v206 = vld [vmem:[#allocation6 + $0x34] sm:$0xf]
    %v207 = vld [vmem:[#allocation6 + $0x38] sm:$0xf]
    %v208 = vld [vmem:[#allocation6 + $0x3c] sm:$0xf]
    %v211 = vunpack.c.l.b16 %v191
    %v212 = vunpack.c.l.b16 %v192
    %v213 = vpack.c.b16 %v212, %v211
    %v231 = vunpack.c.l.b16 %v193
    %v232 = vunpack.c.l.b16 %v194
    %v233 = vunpack.c.l.b16 %v195
    %v234 = vunpack.c.l.b16 %v196
    %v235 = vunpack.c.l.b16 %v197
    %v236 = vunpack.c.l.b16 %v198
    %v237 = vunpack.c.l.b16 %v199
    %v238 = vunpack.c.l.b16 %v200
    %v239 = vunpack.c.l.b16 %v201
    %v240 = vunpack.c.l.b16 %v202
    %v241 = vunpack.c.l.b16 %v203
    %v242 = vunpack.c.l.b16 %v204
    %v243 = vunpack.c.l.b16 %v205
    %v244 = vunpack.c.l.b16 %v206
    %v245 = vunpack.c.l.b16 %v207
    %v246 = vunpack.c.l.b16 %v208
    %v247 = vpack.c.b16 %v232, %v231
    %v248 = vpack.c.b16 %v234, %v233
    %v249 = vpack.c.b16 %v236, %v235
    %v250 = vpack.c.b16 %v238, %v237
    %v251 = vpack.c.b16 %v240, %v239
    %v252 = vpack.c.b16 %v242, %v241
    %v253 = vpack.c.b16 %v244, %v243
    %v254 = vpack.c.b16 %v246, %v245
    %263 = vmatprep.subr.bf16.mxu0 0
    %264 = vmatpush1.bf16.msra.mxu0 %v247
    %265 = vmatprep.subr.bf16.mxu0 0
    %266 = vmatpush1.bf16.msra.mxu0 %v248
    %267 = vmatprep.subr.bf16.mxu0 0
    %268 = vmatpush1.bf16.msra.mxu0 %v249
    %269 = vmatprep.subr.bf16.mxu0 0
    %270 = vmatpush1.bf16.msra.mxu0 %v250
    %271 = vmatprep.subr.bf16.mxu0 0
    %272 = vmatpush1.bf16.msra.mxu0 %v251
    %273 = vmatprep.subr.bf16.mxu0 0
    %274 = vmatpush1.bf16.msra.mxu0 %v252
    %275 = vmatprep.subr.bf16.mxu0 0
    %276 = vmatpush1.bf16.msra.mxu0 %v253
    %277 = vmatprep.subr.bf16.mxu0 0
    %278 = vmatpush1.bf16.msra.mxu0 %v254
    %279 = vmatprep.subr.bf16.mxu0 0
    %280 = vmatpush1.bf16.msra.mxu0 0
    %281 = vmatprep.subr.bf16.mxu0 0
    %282 = vmatpush1.bf16.msra.mxu0 0
    %283 = vmatprep.subr.bf16.mxu0 0
    %284 = vmatpush1.bf16.msra.mxu0 0
    %285 = vmatprep.subr.bf16.mxu0 0
    %286 = vmatpush1.bf16.msra.mxu0 0
    %287 = vmatprep.subr.bf16.mxu0 0
    %288 = vmatpush1.bf16.msra.mxu0 0
    %289 = vmatprep.subr.bf16.mxu0 0
    %290 = vmatpush1.bf16.msra.mxu0 0
    %291 = vmatprep.subr.bf16.mxu0 0
    %292 = vmatpush1.bf16.msra.mxu0 0
    %293 = vmatprep.subr.bf16.mxu0 0
    %294 = vmatpush1.bf16.msra.mxu0 0
    %295 = vmatprep.mubr.bf16.mxu0 0
    %296 = vmatmul.mubr.bf16.gmra.mrb[0].mxu0 %v213
    %v297 = vpop.f32.mrb[0].mxu0
    %v298 = vadd.f32 0.0, %v297
    %v299 = vpop.f32.mrb[0].mxu0
    %v300 = vpop.f32.mrb[0].mxu0
    %v301 = vadd.f32 0.0, %v300
    %v302 = vpop.f32.mrb[0].mxu0
    %303 = vdwg.mxu0
    %v304 = vadd.f32 %v189, %v298
    %v305 = vadd.f32 %v190, %v301
    %306 = vst [vmem:[#allocation2] sm:$0xff] %v304
    %307 = vst [vmem:[#allocation2 + $0x8] sm:$0xff] %v305
    // Predicated region
    $region38: #{tpu_custom_call.1} parent=1 // pred_check
      %p308 = pneg %p63
    $region39: #{tpu_custom_call.1} parent=1 // pred_check_branch
      %310 = sbr.rel (%p308) target = $region41
    $region40: #{tpu_custom_call.1} parent=1 // pred_region
      %v311 = vld [vmem:[#allocation2] sm:$0xff]
      %v312 = vld [vmem:[#allocation2 + $0x8] sm:$0xff]
      %313 = vst [vmem:[#allocation9] sm:$0xff] %v311
      %314 = vst [vmem:[#allocation9 + $0x8] sm:$0xff] %v312
    $region41: #{tpu_custom_call.1} parent=1 // pred_fallthru
      _
    // Predicated region
    $region42: #{tpu_custom_call.1} parent=1 // pred_check
      _
    $region43: #{tpu_custom_call.1} parent=1 // pred_check_branch
      %316 = sbr.rel (0) target = $region45
    $region44: #{tpu_custom_call.1} parent=1 // pred_region
      %s318 = ssub.s32 256, 256
      %319 = vsyncadd [#allocation5], %s318
      %s320 = sshll.u32 [#allocation9], 4
      %s321 = int_to_ptr.vmem [resolvable:$true] %s320
      %326 = dma.vmem_to_hbm [thread:$0]  %s321, 256, %s5, [#allocation5], 128, 128, 8
    $region45: #{tpu_custom_call.1} parent=1 // pred_fallthru
      _
    // Predicated region
    $region46: #{tpu_custom_call.1} parent=1 // pred_check
      _
    $region47: #{tpu_custom_call.1} parent=1 // pred_check_branch
      %328 = sbr.rel (0) target = $region49
    $region48: #{tpu_custom_call.1} parent=1 // pred_region
      %329 = dma.done [#allocation5], 256
    $region49: #{tpu_custom_call.1} parent=1 // pred_fallthru
      _
    %330 = vsyncpa [#allocation4], 1
    %331 = vsyncpa [#allocation7], 1
    %332 = vsyncpa [#allocation5], 1

</llo_original>
